<compile_context>
chip_gen: v6e
topology: v6e:2x2x1
jax: 0.10.0
libtpu: 0.0.40
codegen_flags: <defaults>
</compile_context>

<pallas_src>
import functools

import jax
import jax.numpy as jnp
from jax.experimental import pallas as pl
from jax.experimental.pallas import tpu as pltpu


def _round_up(x, m):
    return (x + m - 1) // m * m


# -----------------------------------------------------------------------------
# Kernel 1: (rows x cols)-tiled matmul with fused bias.
# Used for (1) the hoisted input-gate precompute and (3) the output projection.
# -----------------------------------------------------------------------------
def _matmul_bias_kernel(x_ref, w_ref, b_ref, o_ref):
    acc = jnp.dot(x_ref[...], w_ref[...], preferred_element_type=jnp.float32)
    o_ref[...] = (acc + b_ref[...]).astype(o_ref.dtype)


def _matmul_bias(x, w, b, out_dtype, row_tile=512, col_tile=1024):
    """[M,K](bf16) @ [K,N](bf16) + [1,N](f32) -> [M,N](out_dtype).

    Tiled over M (row_tile) AND N (col_tile, multiple of 128) with a fully
    parallel 2-D grid (shards across TCs on v7x).  K stays a full block.
    """
    M, K = x.shape
    N = w.shape[1]

    tm = min(row_tile, _round_up(M, 8))            # sublane-aligned row tile
    m_pad = _round_up(M, tm)
    if m_pad != M:
        x = jnp.pad(x, ((0, m_pad - M), (0, 0)))

    if N <= col_tile:
        tn, n_pad = N, N                           # full-extent block is legal
    else:
        tn = col_tile                              # multiple of 128
        n_pad = _round_up(N, tn)
        if n_pad != N:
            w = jnp.pad(w, ((0, 0), (0, n_pad - N)))
            b = jnp.pad(b, ((0, 0), (0, n_pad - N)))

    out_bytes = jnp.dtype(out_dtype).itemsize
    needed = 2 * (tm * K * x.dtype.itemsize        # double-buffered blocks
                  + K * tn * w.dtype.itemsize
                  + tn * b.dtype.itemsize
                  + tm * tn * out_bytes)
    vmem_limit = int(min(max(2 * needed, 32 << 20), 64 << 20))

    out = pl.pallas_call(
        _matmul_bias_kernel,
        out_shape=jax.ShapeDtypeStruct((m_pad, n_pad), out_dtype),
        grid=(m_pad // tm, n_pad // tn),
        in_specs=[
            pl.BlockSpec((tm, K), lambda i, j: (i, 0)),   # activations
            pl.BlockSpec((K, tn), lambda i, j: (0, j)),   # weight column tile
            pl.BlockSpec((1, tn), lambda i, j: (0, j)),   # bias column tile
        ],
        out_specs=pl.BlockSpec((tm, tn), lambda i, j: (i, j)),
        compiler_params=pltpu.CompilerParams(
            dimension_semantics=("parallel", "parallel"),
            vmem_limit_bytes=vmem_limit,
        ),
    )(x, w, b)
    return out[:M, :N]


# -----------------------------------------------------------------------------
# Kernel 2: the serial LSTM recurrence.
#   grid = (batch_chunks [parallel], T_chunks [arbitrary])
#   h/c carried in f32 VMEM scratch, zeroed only at the first T chunk.
#   Optional 2-stream batch interleave inside each step (MXU/EUP overlap).
# -----------------------------------------------------------------------------
def _lstm_recurrence_kernel(gin_ref, whh_ref, hout_ref, h_sc, c_sc, *,
                            n_streams):
    # gin_ref : [tc, Bb, 4H] f32   precomputed x @ W_ih^T + (b_ih + b_hh)
    # whh_ref : [H, 4H]      bf16
    # hout_ref: [tc, Bb, H]  bf16
    tc, Bb, _ = gin_ref.shape
    H = h_sc.shape[1]
    Bs = Bb // n_streams

    @pl.when(pl.program_id(1) == 0)                # new batch chunk: reset h,c
    def _():
        h_sc[...] = jnp.zeros_like(h_sc)
        c_sc[...] = jnp.zeros_like(c_sc)

    @pl.loop(0, tc)
    def _(t):
        g_row = gin_ref[t]                         # [Bb, 4H] f32
        # Stage 1: issue the recurrent matmuls for all streams first so the
        # MXU work of stream s+1 can overlap the EUP/VPU gating of stream s.
        gates = []
        for s in range(n_streams):
            h_prev = h_sc[pl.ds(s * Bs, Bs), :]    # f32 carry
            gates.append(
                g_row[s * Bs:(s + 1) * Bs, :]
                + jnp.dot(h_prev.astype(whh_ref.dtype), whh_ref[...],
                          preferred_element_type=jnp.float32))
        # Stage 2: f32 gating math (PyTorch gate order i, f, g, o).
        # NOTE: these are lane sub-slices; make H a multiple of 128 in
        # production to avoid per-step lane masking/relayout.
        for s in range(n_streams):
            g = gates[s]
            c_prev = c_sc[pl.ds(s * Bs, Bs), :]
            i_g = jax.nn.sigmoid(g[:, 0 * H:1 * H])
            f_g = jax.nn.sigmoid(g[:, 1 * H:2 * H])
            g_g = jnp.tanh(g[:, 2 * H:3 * H])
            o_g = jax.nn.sigmoid(g[:, 3 * H:4 * H])
            c_new = f_g * c_prev + i_g * g_g
            h_new = o_g * jnp.tanh(c_new)
            c_sc[pl.ds(s * Bs, Bs), :] = c_new
            h_sc[pl.ds(s * Bs, Bs), :] = h_new
        hout_ref[t] = h_sc[...].astype(hout_ref.dtype)


def _lstm_recurrence(gates_in_tbg, w_hh_t, *, t_chunk=None, b_chunks=1):
    """gates_in_tbg: [T, B, 4H] f32, w_hh_t: [H, 4H] bf16 -> h_all [T, B, H] bf16."""
    T, B, G = gates_in_tbg.shape
    H = w_hh_t.shape[0]

    # Batch split across TensorCores (set b_chunks=2 on v7x). Only allowed
    # when the per-chunk batch stays sublane-aligned.
    if b_chunks < 1:
        b_chunks = 1
    if b_chunks > 1 and (B % b_chunks != 0 or (B // b_chunks) % 8 != 0):
        b_chunks = 1
    Bb = B // b_chunks

    # T chunking: bounds VMEM and lets Pallas double-buffer the gates_in DMA
    # of chunk i+1 under the compute of chunk i.
    if t_chunk is None:
        budget = 2 << 20                            # ~2 MiB of gates per chunk
        t_chunk = max(1, min(T, budget // max(1, Bb * G * 4)))
    t_chunk = max(1, min(t_chunk, T))
    T_pad = _round_up(T, t_chunk)
    if T_pad != T:
        gates_in_tbg = jnp.pad(gates_in_tbg,
                               ((0, T_pad - T), (0, 0), (0, 0)))
    nt = T_pad // t_chunk

    # Intra-step interleave of two independent batch streams (MXU vs EUP
    # overlap) when the sub-block stays sublane-aligned.
    n_streams = 2 if (Bb % 16 == 0) else 1

    needed = (2 * t_chunk * Bb * G * 4              # gates_in double buffer
              + 2 * t_chunk * Bb * H * 2            # hout double buffer
              + 2 * H * G * 2                       # resident W_hh
              + 2 * Bb * H * 4)                     # f32 h/c scratch
    vmem_limit = int(min(max(2 * needed, 32 << 20), 64 << 20))

    kernel = functools.partial(_lstm_recurrence_kernel, n_streams=n_streams)
    h_all = pl.pallas_call(
        kernel,
        out_shape=jax.ShapeDtypeStruct((T_pad, B, H), jnp.bfloat16),
        grid=(b_chunks, nt),
        in_specs=[
            pl.BlockSpec((t_chunk, Bb, G), lambda bi, ti: (ti, bi, 0)),
            pl.BlockSpec((H, G), lambda bi, ti: (0, 0)),
        ],
        out_specs=pl.BlockSpec((t_chunk, Bb, H), lambda bi, ti: (ti, bi, 0)),
        scratch_shapes=[
            pltpu.VMEM((Bb, H), jnp.float32),       # h carry (f32)
            pltpu.VMEM((Bb, H), jnp.float32),       # c carry (f32)
        ],
        compiler_params=pltpu.CompilerParams(
            dimension_semantics=("parallel", "arbitrary"),
            vmem_limit_bytes=vmem_limit,
        ),
    )(gates_in_tbg, w_hh_t)
    return h_all[:T] if T_pad != T else h_all


# -----------------------------------------------------------------------------
# DecoderRNN forward (embedding + concat are glue in plain JAX)
# -----------------------------------------------------------------------------
def decoder_rnn_forward(params, features, captions, *, t_chunk=None,
                        b_chunks=1):
    """features: [B, E] f32, captions: [B, Tc] int32 -> logits [B, Tc, V] f32."""
    emb = params["embedding"][captions[:, :-1]]               # [B, Tc-1, E]
    x = jnp.concatenate([features[:, None, :], emb], 1)       # [B, T, E]
    B, T, E = x.shape
    H = params["w_hh_t"].shape[0]
    V = params["w_out_t"].shape[1]

    # Time-major for the recurrence; bf16 matmul operands.
    x_tm = jnp.transpose(x, (1, 0, 2)).astype(jnp.bfloat16)   # [T, B, E]

    # (1) Hoisted input-side gate matmul over M = T*B rows, bias fused.
    gates_in = _matmul_bias(
        x_tm.reshape(T * B, E), params["w_ih_t"], params["b_gates"],
        out_dtype=jnp.float32).reshape(T, B, 4 * H)

    # (2) Serial recurrence (only h @ W_hh^T + gating per step).
    h_all = _lstm_recurrence(gates_in, params["w_hh_t"],
                             t_chunk=t_chunk, b_chunks=b_chunks)  # [T,B,H] bf16

    # (3) Deferred output projection over M = B*T rows; produced batch-major so
    # the V-wide logits are never transposed in HBM (only the small H-wide
    # hidden tensor is).
    # TODO(synk): fold this small transpose into the projection BlockSpec.
    h_bt = jnp.transpose(h_all, (1, 0, 2)).reshape(B * T, H)
    logits = _matmul_bias(h_bt, params["w_out_t"], params["b_out"],
                          out_dtype=jnp.float32)               # [B*T, V]
    return logits.reshape(B, T, V)


# -----------------------------------------------------------------------------
# Pure-JAX reference with the SAME precision plan (bf16 matmul operands,
# f32 accumulation, f32 carries/gating) for a tight correctness check.
# -----------------------------------------------------------------------------
def decoder_rnn_reference(params, features, captions):
    emb = params["embedding"][captions[:, :-1]]
    x = jnp.concatenate([features[:, None, :], emb], 1)       # [B, T, E]
    B, T, E = x.shape
    H = params["w_hh_t"].shape[0]

    x_bf = x.astype(jnp.bfloat16)
    gates_in = (jnp.einsum("bte,eg->btg", x_bf, params["w_ih_t"],
                           preferred_element_type=jnp.float32)
                + params["b_gates"][0])                        # [B, T, 4H] f32

    def step(carry, g_t):
        h, c = carry
        gates = g_t + jnp.dot(h.astype(jnp.bfloat16), params["w_hh_t"],
                              preferred_element_type=jnp.float32)
        i_g = jax.nn.sigmoid(gates[:, 0 * H:1 * H])
        f_g = jax.nn.sigmoid(gates[:, 1 * H:2 * H])
        g_g = jnp.tanh(gates[:, 2 * H:3 * H])
        o_g = jax.nn.sigmoid(gates[:, 3 * H:4 * H])
        c_new = f_g * c + i_g * g_g
        h_new = o_g * jnp.tanh(c_new)
        return (h_new, c_new), h_new.astype(jnp.bfloat16)

    h0 = jnp.zeros((B, H), jnp.float32)
    c0 = jnp.zeros((B, H), jnp.float32)
    _, hs = jax.lax.scan(step, (h0, c0), jnp.transpose(gates_in, (1, 0, 2)))
    hs = jnp.transpose(hs, (1, 0, 2))                          # [B, T, H] bf16
    return (jnp.einsum("bth,hv->btv", hs, params["w_out_t"],
                       preferred_element_type=jnp.float32)
            + params["b_out"][0])


# -----------------------------------------------------------------------------
# Deterministic parameter initialization (shapes from DecoderRNN.__init__)
# -----------------------------------------------------------------------------
def init_params(key, embed_size, hidden_size, vocab_size):
    ks = jax.random.split(key, 7)
    bound = 1.0 / jnp.sqrt(hidden_size)
    embedding = jax.random.normal(ks[0], (vocab_size, embed_size), jnp.float32)
    w_ih = jax.random.uniform(ks[1], (4 * hidden_size, embed_size), jnp.float32,
                              -bound, bound)
    w_hh = jax.random.uniform(ks[2], (4 * hidden_size, hidden_size), jnp.float32,
                              -bound, bound)
    b_ih = jax.random.uniform(ks[3], (4 * hidden_size,), jnp.float32, -bound, bound)
    b_hh = jax.random.uniform(ks[4], (4 * hidden_size,), jnp.float32, -bound, bound)
    w_out = jax.random.uniform(ks[5], (vocab_size, hidden_size), jnp.float32,
                               -bound, bound)
    b_out = jax.random.uniform(ks[6], (vocab_size,), jnp.float32, -bound, bound)
    return {
        "embedding": embedding,                                 # [V, E] f32
        "w_ih_t": jnp.transpose(w_ih).astype(jnp.bfloat16),     # [E, 4H] bf16
        "w_hh_t": jnp.transpose(w_hh).astype(jnp.bfloat16),     # [H, 4H] bf16
        "b_gates": (b_ih + b_hh)[None, :],                      # [1, 4H] f32
        "w_out_t": jnp.transpose(w_out).astype(jnp.bfloat16),   # [H, V] bf16
        "b_out": b_out[None, :],                                # [1, V] f32
    }


if __name__ == "__main__":
    # Small shapes consistent with the module's forward.
    B, Tc = 2, 8             # batch, caption length (LSTM sees T = Tc timesteps)
    embed_size = 32
    hidden_size = 32
    vocab_size = 64

    key = jax.random.PRNGKey(0)
    k_feat, k_cap, k_param = jax.random.split(key, 3)

    params = init_params(k_param, embed_size, hidden_size, vocab_size)
    features = jax.random.normal(k_feat, (B, embed_size), jnp.float32)
    captions = jax.random.randint(k_cap, (B, Tc), 0, vocab_size, jnp.int32)

    # t_chunk=4 exercises the chunked recurrence path (2 T-chunks + pl.when
    # carry-init gate); b_chunks stays 1 here (set 2 on v7x with B % 16 == 0).
    fwd = jax.jit(functools.partial(decoder_rnn_forward, params, t_chunk=4))
    out = fwd(features, captions)
    jax.block_until_ready(out)

    ref = decoder_rnn_reference(params, features, captions)
    assert out.shape == (B, Tc, vocab_size), out.shape
    err = float(jnp.max(jnp.abs(out - ref)))
    assert jnp.allclose(out, ref, atol=1e-3, rtol=1e-3), f"mismatch, max err {err}"

    print("KERNEL_OK")
</pallas_src>

<mosaic_0001>
module attributes {stable_mosaic.version = 11 : i64} {
  func.func @_matmul_bias_kernel(%arg0: i32, %arg1: i32, %arg2: memref<16x32xbf16, #tpu.memory_space<vmem>>, %arg3: memref<32x128xbf16, #tpu.memory_space<vmem>>, %arg4: memref<1x128xf32, #tpu.memory_space<vmem>>, %arg5: memref<16x128xf32, #tpu.memory_space<vmem>>) attributes {dimension_semantics = [#tpu.dimension_semantics<parallel>, #tpu.dimension_semantics<parallel>], iteration_bounds = array<i64: 1, 1>, scalar_prefetch = 0 : i64, scratch_operands = 0 : i64, tpu.core_type = #tpu.core_type<tc>, window_params = [{transform_indices = @transform_0, window_bounds = array<i64: 16, 32>}, {transform_indices = @transform_1, window_bounds = array<i64: 32, 128>}, {transform_indices = @transform_2, window_bounds = array<i64: 1, 128>}, {transform_indices = @transform_3, window_bounds = array<i64: 16, 128>}]} {
    %c0 = arith.constant 0 : index
    %c0_0 = arith.constant 0 : index
    %0 = vector.load %arg2[%c0, %c0_0] : memref<16x32xbf16, #tpu.memory_space<vmem>>, vector<16x32xbf16>
    %c0_1 = arith.constant 0 : index
    %c0_2 = arith.constant 0 : index
    %1 = vector.load %arg3[%c0_1, %c0_2] : memref<32x128xbf16, #tpu.memory_space<vmem>>, vector<32x128xbf16>
    %cst = arith.constant dense<0.000000e+00> : vector<16x128xf32>
    %2 = tpu.matmul %0, %1, %cst {dimension_numbers = #tpu.dot_dimension_numbers<[1], [0], [0], [1], [0, 0, 1, 1], [], []>} : vector<16x32xbf16>, vector<32x128xbf16>, vector<16x128xf32> -> vector<16x128xf32>
    %c0_3 = arith.constant 0 : index
    %c0_4 = arith.constant 0 : index
    %3 = vector.load %arg4[%c0_3, %c0_4] : memref<1x128xf32, #tpu.memory_space<vmem>>, vector<1x128xf32>
    %4 = vector.broadcast %3 : vector<1x128xf32> to vector<16x128xf32>
    %5 = arith.addf %2, %4 : vector<16x128xf32>
    %c0_5 = arith.constant 0 : index
    %c0_6 = arith.constant 0 : index
    %6 = vector.load %arg5[%c0_5, %c0_6] : memref<16x128xf32, #tpu.memory_space<vmem>>, vector<16x128xf32>
    tpu.vector_store %arg5[%c0_5, %c0_6], %5 {strides = array<i32>} : memref<16x128xf32, #tpu.memory_space<vmem>>, vector<16x128xf32>,
    return
  }
  func.func @transform_0(%arg0: i32, %arg1: i32) -> (i32, i32) {
    %c0_i32 = arith.constant 0 : i32
    %c0_i32_0 = arith.constant 0 : i32
    return %arg0, %c0_i32 : i32, i32
  }
  func.func @transform_1(%arg0: i32, %arg1: i32) -> (i32, i32) {
    %c0_i32 = arith.constant 0 : i32
    %c0_i32_0 = arith.constant 0 : i32
    return %c0_i32, %arg1 : i32, i32
  }
  func.func @transform_2(%arg0: i32, %arg1: i32) -> (i32, i32) {
    %c0_i32 = arith.constant 0 : i32
    %c0_i32_0 = arith.constant 0 : i32
    return %c0_i32, %arg1 : i32, i32
  }
  func.func @transform_3(%arg0: i32, %arg1: i32) -> (i32, i32) {
    %c0_i32 = arith.constant 0 : i32
    return %arg0, %arg1 : i32, i32
  }
}

module attributes {stable_mosaic.version = 11 : i64} {
  func.func @_matmul_bias_kernel(%arg0: i32, %arg1: i32, %arg2: memref<16x32xbf16, #tpu.memory_space<vmem>>, %arg3: memref<32x64xbf16, #tpu.memory_space<vmem>>, %arg4: memref<1x64xf32, #tpu.memory_space<vmem>>, %arg5: memref<16x64xf32, #tpu.memory_space<vmem>>) attributes {dimension_semantics = [#tpu.dimension_semantics<parallel>, #tpu.dimension_semantics<parallel>], iteration_bounds = array<i64: 1, 1>, scalar_prefetch = 0 : i64, scratch_operands = 0 : i64, tpu.core_type = #tpu.core_type<tc>, window_params = [{transform_indices = @transform_0, window_bounds = array<i64: 16, 32>}, {transform_indices = @transform_1, window_bounds = array<i64: 32, 64>}, {transform_indices = @transform_2, window_bounds = array<i64: 1, 64>}, {transform_indices = @transform_3, window_bounds = array<i64: 16, 64>}]} {
    %c0 = arith.constant 0 : index
    %c0_0 = arith.constant 0 : index
    %0 = vector.load %arg2[%c0, %c0_0] : memref<16x32xbf16, #tpu.memory_space<vmem>>, vector<16x32xbf16>
    %c0_1 = arith.constant 0 : index
    %c0_2 = arith.constant 0 : index
    %1 = vector.load %arg3[%c0_1, %c0_2] : memref<32x64xbf16, #tpu.memory_space<vmem>>, vector<32x64xbf16>
    %cst = arith.constant dense<0.000000e+00> : vector<16x64xf32>
    %2 = tpu.matmul %0, %1, %cst {dimension_numbers = #tpu.dot_dimension_numbers<[1], [0], [0], [1], [0, 0, 1, 1], [], []>} : vector<16x32xbf16>, vector<32x64xbf16>, vector<16x64xf32> -> vector<16x64xf32>
    %c0_3 = arith.constant 0 : index
    %c0_4 = arith.constant 0 : index
    %3 = vector.load %arg4[%c0_3, %c0_4] : memref<1x64xf32, #tpu.memory_space<vmem>>, vector<1x64xf32>
    %4 = vector.broadcast %3 : vector<1x64xf32> to vector<16x64xf32>
    %5 = arith.addf %2, %4 : vector<16x64xf32>
    %c0_5 = arith.constant 0 : index
    %c0_6 = arith.constant 0 : index
    %6 = vector.load %arg5[%c0_5, %c0_6] : memref<16x64xf32, #tpu.memory_space<vmem>>, vector<16x64xf32>
    tpu.vector_store %arg5[%c0_5, %c0_6], %5 {strides = array<i32>} : memref<16x64xf32, #tpu.memory_space<vmem>>, vector<16x64xf32>,
    return
  }
  func.func @transform_0(%arg0: i32, %arg1: i32) -> (i32, i32) {
    %c0_i32 = arith.constant 0 : i32
    %c0_i32_0 = arith.constant 0 : i32
    return %arg0, %c0_i32 : i32, i32
  }
  func.func @transform_1(%arg0: i32, %arg1: i32) -> (i32, i32) {
    %c0_i32 = arith.constant 0 : i32
    %c0_i32_0 = arith.constant 0 : i32
    return %c0_i32, %arg1 : i32, i32
  }
  func.func @transform_2(%arg0: i32, %arg1: i32) -> (i32, i32) {
    %c0_i32 = arith.constant 0 : i32
    %c0_i32_0 = arith.constant 0 : i32
    return %c0_i32, %arg1 : i32, i32
  }
  func.func @transform_3(%arg0: i32, %arg1: i32) -> (i32, i32) {
    %c0_i32 = arith.constant 0 : i32
    return %arg0, %arg1 : i32, i32
  }
}

module attributes {stable_mosaic.version = 11 : i64} {
  func.func @_lstm_recurrence_kernel(%arg0: i32, %arg1: i32, %arg2: memref<4x2x128xf32, #tpu.memory_space<vmem>>, %arg3: memref<32x128xbf16, #tpu.memory_space<vmem>>, %arg4: memref<4x2x32xbf16, #tpu.memory_space<vmem>>, %arg5: memref<2x32xf32, #tpu.memory_space<vmem>>, %arg6: memref<2x32xf32, #tpu.memory_space<vmem>>) attributes {dimension_semantics = [#tpu.dimension_semantics<parallel>, #tpu.dimension_semantics<arbitrary>], iteration_bounds = array<i64: 1, 2>, scalar_prefetch = 0 : i64, scratch_operands = 2 : i64, tpu.core_type = #tpu.core_type<tc>, window_params = [{transform_indices = @transform_0, window_bounds = array<i64: 4, 2, 128>}, {pipeline_mode = #tpu.pipeline_mode<synchronous>, transform_indices = @transform_1, window_bounds = array<i64: 32, 128>}, {transform_indices = @transform_2, window_bounds = array<i64: 4, 2, 32>}]} {
    %c0_i32 = arith.constant 0 : i32
    %0 = arith.cmpi eq, %arg1, %c0_i32 : i32
    %1 = arith.extui %0 : i1 to i32
    %c0_i32_0 = arith.constant 0 : i32
    %2 = arith.cmpi ne, %1, %c0_i32_0 : i32
    scf.if %2 {
      %cst = arith.constant 0.000000e+00 : f32
      %4 = vector.broadcast %cst : f32 to vector<2x32xf32>
      %c0 = arith.constant 0 : index
      %c0_3 = arith.constant 0 : index
      %5 = vector.load %arg5[%c0, %c0_3] : memref<2x32xf32, #tpu.memory_space<vmem>>, vector<2x32xf32>
      tpu.vector_store %arg5[%c0, %c0_3], %4 {strides = array<i32>} : memref<2x32xf32, #tpu.memory_space<vmem>>, vector<2x32xf32>,
      %cst_4 = arith.constant 0.000000e+00 : f32
      %6 = vector.broadcast %cst_4 : f32 to vector<2x32xf32>
      %c0_5 = arith.constant 0 : index
      %c0_6 = arith.constant 0 : index
      %7 = vector.load %arg6[%c0_5, %c0_6] : memref<2x32xf32, #tpu.memory_space<vmem>>, vector<2x32xf32>
      tpu.vector_store %arg6[%c0_5, %c0_6], %6 {strides = array<i32>} : memref<2x32xf32, #tpu.memory_space<vmem>>, vector<2x32xf32>,
    } else {
    }
    %c0_i32_1 = arith.constant 0 : i32
    %c4_i32 = arith.constant 4 : i32
    %3 = arith.addi %c0_i32_1, %c4_i32 : i32
    %c1_i32 = arith.constant 1 : i32
    scf.for %arg7 = %c0_i32_1 to %3 step %c1_i32  : i32 {
      %c1_i32_3 = arith.constant 1 : i32
      %4 = arith.muli %arg7, %c1_i32_3 : i32
      %c0_i32_4 = arith.constant 0 : i32
      %5 = arith.addi %c0_i32_4, %4 : i32
      %6 = arith.index_cast %5 : i32 to index
      %c0 = arith.constant 0 : index
      %c0_5 = arith.constant 0 : index
      %7 = vector.load %arg2[%6, %c0, %c0_5] : memref<4x2x128xf32, #tpu.memory_space<vmem>>, vector<1x2x128xf32>
      %8 = vector.shape_cast %7 : vector<1x2x128xf32> to vector<2x128xf32>
      %c0_6 = arith.constant 0 : index
      %c0_7 = arith.constant 0 : index
      %9 = vector.load %arg5[%c0_6, %c0_7] : memref<2x32xf32, #tpu.memory_space<vmem>>, vector<2x32xf32>
      %10 = arith.truncf %9 : vector<2x32xf32> to vector<2x32xbf16>
      %c0_8 = arith.constant 0 : index
      %c0_9 = arith.constant 0 : index
      %11 = vector.load %arg3[%c0_8, %c0_9] : memref<32x128xbf16, #tpu.memory_space<vmem>>, vector<32x128xbf16>
      %cst = arith.constant dense<0.000000e+00> : vector<2x128xf32>
      %12 = tpu.matmul %10, %11, %cst {dimension_numbers = #tpu.dot_dimension_numbers<[1], [0], [0], [1], [0, 0, 1, 1], [], []>} : vector<2x32xbf16>, vector<32x128xbf16>, vector<2x128xf32> -> vector<2x128xf32>
      %13 = arith.addf %8, %12 : vector<2x128xf32>
      %c0_10 = arith.constant 0 : index
      %c0_11 = arith.constant 0 : index
      %14 = vector.load %arg6[%c0_10, %c0_11] : memref<2x32xf32, #tpu.memory_space<vmem>>, vector<2x32xf32>
      %15 = vector.extract_strided_slice %13 {offsets = [0, 0], sizes = [2, 32], strides = [1, 1]} : vector<2x128xf32> to vector<2x32xf32>
      %16 = arith.negf %15 : vector<2x32xf32>
      %17 = math.exp %16 : vector<2x32xf32>
      %cst_12 = arith.constant 1.000000e+00 : f32
      %18 = vector.broadcast %cst_12 : f32 to vector<2x32xf32>
      %19 = arith.addf %18, %17 : vector<2x32xf32>
      %20 = arith.divf %18, %19 : vector<2x32xf32>
      %21 = vector.extract_strided_slice %13 {offsets = [0, 32], sizes = [2, 32], strides = [1, 1]} : vector<2x128xf32> to vector<2x32xf32>
      %22 = arith.negf %21 : vector<2x32xf32>
      %23 = math.exp %22 : vector<2x32xf32>
      %cst_13 = arith.constant 1.000000e+00 : f32
      %24 = vector.broadcast %cst_13 : f32 to vector<2x32xf32>
      %25 = arith.addf %24, %23 : vector<2x32xf32>
      %26 = arith.divf %24, %25 : vector<2x32xf32>
      %27 = vector.extract_strided_slice %13 {offsets = [0, 64], sizes = [2, 32], strides = [1, 1]} : vector<2x128xf32> to vector<2x32xf32>
      %28 = math.tanh %27 : vector<2x32xf32>
      %29 = vector.extract_strided_slice %13 {offsets = [0, 96], sizes = [2, 32], strides = [1, 1]} : vector<2x128xf32> to vector<2x32xf32>
      %30 = arith.negf %29 : vector<2x32xf32>
      %31 = math.exp %30 : vector<2x32xf32>
      %cst_14 = arith.constant 1.000000e+00 : f32
      %32 = vector.broadcast %cst_14 : f32 to vector<2x32xf32>
      %33 = arith.addf %32, %31 : vector<2x32xf32>
      %34 = arith.divf %32, %33 : vector<2x32xf32>
      %35 = arith.mulf %26, %14 : vector<2x32xf32>
      %36 = arith.mulf %20, %28 : vector<2x32xf32>
      %37 = arith.addf %35, %36 : vector<2x32xf32>
      %38 = math.tanh %37 : vector<2x32xf32>
      %39 = arith.mulf %34, %38 : vector<2x32xf32>
      %c0_15 = arith.constant 0 : index
      %c0_16 = arith.constant 0 : index
      %40 = vector.load %arg6[%c0_15, %c0_16] : memref<2x32xf32, #tpu.memory_space<vmem>>, vector<2x32xf32>
      tpu.vector_store %arg6[%c0_15, %c0_16], %37 {strides = array<i32>} : memref<2x32xf32, #tpu.memory_space<vmem>>, vector<2x32xf32>,
      %c0_17 = arith.constant 0 : index
      %c0_18 = arith.constant 0 : index
      %41 = vector.load %arg5[%c0_17, %c0_18] : memref<2x32xf32, #tpu.memory_space<vmem>>, vector<2x32xf32>
      tpu.vector_store %arg5[%c0_17, %c0_18], %39 {strides = array<i32>} : memref<2x32xf32, #tpu.memory_space<vmem>>, vector<2x32xf32>,
      %c0_19 = arith.constant 0 : index
      %c0_20 = arith.constant 0 : index
      %42 = vector.load %arg5[%c0_19, %c0_20] : memref<2x32xf32, #tpu.memory_space<vmem>>, vector<2x32xf32>
      %43 = arith.truncf %42 : vector<2x32xf32> to vector<2x32xbf16>
      %44 = arith.index_cast %5 : i32 to index
      %c0_21 = arith.constant 0 : index
      %c0_22 = arith.constant 0 : index
      %45 = vector.load %arg4[%44, %c0_21, %c0_22] : memref<4x2x32xbf16, #tpu.memory_space<vmem>>, vector<1x2x32xbf16>
      %46 = vector.shape_cast %45 : vector<1x2x32xbf16> to vector<2x32xbf16>
      %47 = vector.shape_cast %43 : vector<2x32xbf16> to vector<1x2x32xbf16>
      tpu.vector_store %arg4[%44, %c0_21, %c0_22], %47 {strides = array<i32>} : memref<4x2x32xbf16, #tpu.memory_space<vmem>>, vector<1x2x32xbf16>,
    }
    %c4_i32_2 = arith.constant 4 : i32
    return
  }
  func.func @transform_0(%arg0: i32, %arg1: i32) -> (i32, i32, i32) {
    %c0_i32 = arith.constant 0 : i32
    %c0_i32_0 = arith.constant 0 : i32
    return %arg1, %arg0, %c0_i32 : i32, i32, i32
  }
  func.func @transform_1(%arg0: i32, %arg1: i32) -> (i32, i32) {
    %c0_i32 = arith.constant 0 : i32
    %c0_i32_0 = arith.constant 0 : i32
    %c0_i32_1 = arith.constant 0 : i32
    return %c0_i32, %c0_i32_0 : i32, i32
  }
  func.func @transform_2(%arg0: i32, %arg1: i32) -> (i32, i32, i32) {
    %c0_i32 = arith.constant 0 : i32
    %c0_i32_0 = arith.constant 0 : i32
    return %arg1, %arg0, %c0_i32 : i32, i32, i32
  }
}

</mosaic_0001>

<llo_original>
// kernel: decoder_rnn_forward.3
$region0: #{decoder_rnn_forward.3}
  #allocation0 [shape = 'u32[]', space=smem, size = 0x4, offset = 0x4, fixed_abs, tag = 'smem constant byte address 0x4 - core index']
  #allocation1 [shape = 'u32[144,128]{1,0:T(1,128)}', space=vmem, size = 0x12000, scoped, tag = 'internal scratch']
  %s0 = inlined_call_operand.vmem [shape: bf16[16,32], index: 0, kind: input, shape index: {}]
  %s1 = inlined_call_operand.vmem [shape: bf16[32,128], index: 1, kind: input, shape index: {}]
  %s2 = inlined_call_operand.vmem [shape: f32[1,128], index: 2, kind: input, shape index: {}]
  %s3 = inlined_call_operand.vmem [shape: f32[16,128], index: 3, kind: output, shape index: {}]
  %s4 = sld [smem:[#allocation0]]
  $region22: #{decoder_rnn_forward.3} parent=0
    _
  %s6 = ssub.s32 1, %s4
  %s7 = scalar_select 0, %s6, %s4
  // Predicated region
  $region2: #{decoder_rnn_forward.3} parent=0 // pred_check
    _
  $region3: #{decoder_rnn_forward.3} parent=0 // pred_check_branch
    %9 = sbr.rel (0) target = $region5
  $region4: #{decoder_rnn_forward.3} parent=0 // pred_region
    _
  $region5: #{decoder_rnn_forward.3} parent=0 // pred_fallthru
    _
  // Predicated region
  $region6: #{decoder_rnn_forward.3} parent=0 // pred_check
    _
  $region7: #{decoder_rnn_forward.3} parent=0 // pred_check_branch
    %11 = sbr.rel (0) target = $region9
  $region8: #{decoder_rnn_forward.3} parent=0 // pred_region
    _
  $region9: #{decoder_rnn_forward.3} parent=0 // pred_fallthru
    _
  // Predicated region
  $region10: #{decoder_rnn_forward.3} parent=0 // pred_check
    _
  $region11: #{decoder_rnn_forward.3} parent=0 // pred_check_branch
    %13 = sbr.rel (0) target = $region13
  $region12: #{decoder_rnn_forward.3} parent=0 // pred_region
    _
  $region13: #{decoder_rnn_forward.3} parent=0 // pred_fallthru
    _
  %v15 = vld [vmem:[%s0] sm:$0xf]
  %v16 = vld [vmem:[%s0 + $0x4] sm:$0xf]
  %v17 = vld [vmem:[%s1] sm:$0xf]
  %v18 = vld [vmem:[%s1 + $0x4] sm:$0xf]
  %v19 = vld [vmem:[%s1 + $0x8] sm:$0xf]
  %v20 = vld [vmem:[%s1 + $0xc] sm:$0xf]
  %v21 = vld [vmem:[%s2] sm:$0x1]
  %v23 = vlaneseq
  %v24 = vshrl.u32 %v23, 7
  %v25 = vsub.s32 0, %v24
  %v26 = vrot.slane %v21, %v25
  %v30 = vunpack.c.l.b16 %v15
  %v31 = vunpack.c.l.b16 %v16
  %v32 = vpack.c.b16 %v31, %v30
  %v37 = vunpack.c.l.b16 %v17
  %v38 = vunpack.c.l.b16 %v18
  %v39 = vunpack.c.l.b16 %v19
  %v40 = vunpack.c.l.b16 %v20
  %v41 = vpack.c.b16 %v38, %v37
  %v42 = vpack.c.b16 %v40, %v39
  %vm45 = vcmask 261120
  %v47 = vsel %vm45, %v32, 0
  %49 = vmatprep.subr.bf16.mxu0 0
  %50 = vmatpush1.bf16.msra.mxu0 0
  %51 = vmatprep.subr.bf16.mxu0 0
  %52 = vmatpush1.bf16.msra.mxu0 0
  %53 = vmatprep.subr.bf16.mxu0 0
  %54 = vmatpush1.bf16.msra.mxu0 0
  %55 = vmatprep.subr.bf16.mxu0 0
  %56 = vmatpush1.bf16.msra.mxu0 0
  %57 = vmatprep.subr.bf16.mxu0 0
  %58 = vmatpush1.bf16.msra.mxu0 0
  %59 = vmatprep.subr.bf16.mxu0 0
  %60 = vmatpush1.bf16.msra.mxu0 0
  %61 = vmatprep.subr.bf16.mxu0 0
  %62 = vmatpush1.bf16.msra.mxu0 %v42
  %63 = vmatprep.subr.bf16.mxu0 0
  %64 = vmatpush1.bf16.msra.mxu0 %v41
  %65 = vmatprep.subr.bf16.mxu0 0
  %66 = vmatpush2.bf16.msra.mxu0 0
  %67 = vmatprep.subr.bf16.mxu0 0
  %68 = vmatpush2.bf16.msra.mxu0 0
  %69 = vmatprep.subr.bf16.mxu0 0
  %70 = vmatpush2.bf16.msra.mxu0 0
  %71 = vmatprep.subr.bf16.mxu0 0
  %72 = vmatpush2.bf16.msra.mxu0 0
  %73 = vmatprep.subr.bf16.mxu0 0
  %74 = vmatpush2.bf16.msra.mxu0 0
  %75 = vmatprep.subr.bf16.mxu0 0
  %76 = vmatpush2.bf16.msra.mxu0 0
  %77 = vmatprep.subr.bf16.mxu0 0
  %78 = vmatpush2.bf16.msra.mxu0 0
  %79 = vmatprep.subr.bf16.mxu0 0
  %80 = vmatpush2.bf16.msra.mxu0 0
  %81 = vmatprep.mubr.bf16.mxu0 0
  %82 = vmatmul.mubr.bf16.gmra.mxu0 %v47
  %v83 = vpop.f32.mrf.mxu0
  %v84 = vadd.f32 %v26, %v83
  %v85 = vpop.f32.mrf.mxu0
  %v86 = vpop.f32.mrf.mxu0
  %v87 = vadd.f32 %v26, %v86
  %v88 = vpop.f32.mrf.mxu0
  %89 = vdwg.mxu0
  %90 = vst [vmem:[%s3] sm:$0xff] %v84
  %91 = vst [vmem:[%s3 + $0x8] sm:$0xff] %v87
  // Predicated region
  $region14: #{decoder_rnn_forward.3} parent=0 // pred_check
    _
  $region15: #{decoder_rnn_forward.3} parent=0 // pred_check_branch
    %93 = sbr.rel (0) target = $region17
  $region16: #{decoder_rnn_forward.3} parent=0 // pred_region
    _
  $region17: #{decoder_rnn_forward.3} parent=0 // pred_fallthru
    _
  // Predicated region
  $region18: #{decoder_rnn_forward.3} parent=0 // pred_check
    _
  $region19: #{decoder_rnn_forward.3} parent=0 // pred_check_branch
    %95 = sbr.rel (0) target = $region21
  $region20: #{decoder_rnn_forward.3} parent=0 // pred_region
    _
  $region21: #{decoder_rnn_forward.3} parent=0 // pred_fallthru
    _

// kernel: decoder_rnn_forward.5
$region0: #{decoder_rnn_forward.5}
  #allocation0 [shape = 'u32[]', space=smem, size = 0x4, offset = 0x4, fixed_abs, tag = 'smem constant byte address 0x4 - core index']
  #allocation1 [shape = 'u32[144,128]{1,0:T(1,128)}', space=vmem, size = 0x12000, scoped, tag = 'internal scratch']
  %s0 = inlined_call_operand.vmem [shape: bf16[16,32], index: 0, kind: input, shape index: {}]
  %s1 = inlined_call_operand.vmem [shape: bf16[32,64], index: 1, kind: input, shape index: {}]
  %s2 = inlined_call_operand.vmem [shape: f32[1,64], index: 2, kind: input, shape index: {}]
  %s3 = inlined_call_operand.hbm [shape: f32[16,64], index: 3, kind: output, shape index: {}]
  %s4 = sld [smem:[#allocation0]]
  $region22: #{decoder_rnn_forward.5} parent=0
    _
  %s6 = ssub.s32 1, %s4
  %s7 = scalar_select 0, %s6, %s4
  $region1: #{decoder_rnn_forward.5} parent=0
    #allocation2 [shape = 'u8[8192]{0}', space=vmem, size = 0x2000, scoped, tag = 'output window, operand 0, single buffered']
    #allocation3 [shape = 's32[1]{0}', space=sflag, size = 0x4, scoped, tag = 'scoped memory for decoder_rnn_forward.5']
    %8 = vsyncpa [#allocation3], 0
    // Predicated region
    $region2: #{decoder_rnn_forward.5} parent=1 // pred_check
      _
    $region3: #{decoder_rnn_forward.5} parent=1 // pred_check_branch
      %10 = sbr.rel (0) target = $region5
    $region4: #{decoder_rnn_forward.5} parent=1 // pred_region
      _
    $region5: #{decoder_rnn_forward.5} parent=1 // pred_fallthru
      _
    // Predicated region
    $region6: #{decoder_rnn_forward.5} parent=1 // pred_check
      _
    $region7: #{decoder_rnn_forward.5} parent=1 // pred_check_branch
      %12 = sbr.rel (0) target = $region9
    $region8: #{decoder_rnn_forward.5} parent=1 // pred_region
      _
    $region9: #{decoder_rnn_forward.5} parent=1 // pred_fallthru
      _
    // Predicated region
    $region10: #{decoder_rnn_forward.5} parent=1 // pred_check
      _
    $region11: #{decoder_rnn_forward.5} parent=1 // pred_check_branch
      %14 = sbr.rel (0) target = $region13
    $region12: #{decoder_rnn_forward.5} parent=1 // pred_region
      _
    $region13: #{decoder_rnn_forward.5} parent=1 // pred_fallthru
      _
    %v16 = vld [vmem:[%s0] sm:$0xf]
    %v17 = vld [vmem:[%s0 + $0x4] sm:$0xf]
    %v18 = vld [vmem:[%s1] sm:$0xf]
    %v19 = vld [vmem:[%s1 + $0x4] sm:$0xf]
    %v20 = vld [vmem:[%s1 + $0x8] sm:$0xf]
    %v21 = vld [vmem:[%s1 + $0xc] sm:$0xf]
    %v22 = vld [vmem:[%s2] sm:$0x1]
    %v24 = vlaneseq
    %v25 = vshrl.u32 %v24, 7
    %v26 = vsub.s32 0, %v25
    %v27 = vrot.slane %v22, %v26
    %v31 = vunpack.c.l.b16 %v16
    %v32 = vunpack.c.l.b16 %v17
    %v33 = vpack.c.b16 %v32, %v31
    %v38 = vunpack.c.l.b16 %v18
    %v39 = vunpack.c.l.b16 %v19
    %v40 = vunpack.c.l.b16 %v20
    %v41 = vunpack.c.l.b16 %v21
    %v42 = vpack.c.b16 %v39, %v38
    %v43 = vpack.c.b16 %v41, %v40
    %vm46 = vcmask 261120
    %v48 = vsel %vm46, %v33, 0
    %50 = vmatprep.subr.bf16.mxu0 0
    %51 = vmatpush1.bf16.msra.mxu0 0
    %52 = vmatprep.subr.bf16.mxu0 0
    %53 = vmatpush1.bf16.msra.mxu0 0
    %54 = vmatprep.subr.bf16.mxu0 0
    %55 = vmatpush1.bf16.msra.mxu0 0
    %56 = vmatprep.subr.bf16.mxu0 0
    %57 = vmatpush1.bf16.msra.mxu0 0
    %58 = vmatprep.subr.bf16.mxu0 0
    %59 = vmatpush1.bf16.msra.mxu0 0
    %60 = vmatprep.subr.bf16.mxu0 0
    %61 = vmatpush1.bf16.msra.mxu0 0
    %62 = vmatprep.subr.bf16.mxu0 0
    %63 = vmatpush1.bf16.msra.mxu0 %v43
    %64 = vmatprep.subr.bf16.mxu0 0
    %65 = vmatpush1.bf16.msra.mxu0 %v42
    %66 = vmatprep.subr.bf16.mxu0 0
    %67 = vmatpush2.bf16.msra.mxu0 0
    %68 = vmatprep.subr.bf16.mxu0 0
    %69 = vmatpush2.bf16.msra.mxu0 0
    %70 = vmatprep.subr.bf16.mxu0 0
    %71 = vmatpush2.bf16.msra.mxu0 0
    %72 = vmatprep.subr.bf16.mxu0 0
    %73 = vmatpush2.bf16.msra.mxu0 0
    %74 = vmatprep.subr.bf16.mxu0 0
    %75 = vmatpush2.bf16.msra.mxu0 0
    %76 = vmatprep.subr.bf16.mxu0 0
    %77 = vmatpush2.bf16.msra.mxu0 0
    %78 = vmatprep.subr.bf16.mxu0 0
    %79 = vmatpush2.bf16.msra.mxu0 0
    %80 = vmatprep.subr.bf16.mxu0 0
    %81 = vmatpush2.bf16.msra.mxu0 0
    %82 = vmatprep.mubr.bf16.mxu0 0
    %83 = vmatmul.mubr.bf16.gmra.mxu0 %v48
    %v84 = vpop.f32.mrf.mxu0
    %v85 = vadd.f32 %v27, %v84
    %v86 = vpop.f32.mrf.mxu0
    %v87 = vpop.f32.mrf.mxu0
    %v88 = vadd.f32 %v27, %v87
    %v89 = vpop.f32.mrf.mxu0
    %90 = vdwg.mxu0
    %vm91 = vcmask 523264
    %92 = vst.msk [vmem:[#allocation2] sm:$0xff] %vm91, %v85
    %93 = vst.msk [vmem:[#allocation2 + $0x8] sm:$0xff] %vm91, %v88
    // Predicated region
    $region14: #{decoder_rnn_forward.5} parent=1 // pred_check
      _
    $region15: #{decoder_rnn_forward.5} parent=1 // pred_check_branch
      %95 = sbr.rel (0) target = $region17
    $region16: #{decoder_rnn_forward.5} parent=1 // pred_region
      %s97 = ssub.s32 256, 256
      %98 = vsyncadd [#allocation3], %s97
      %s99 = sshll.u32 [#allocation2], 4
      %s100 = int_to_ptr.vmem [resolvable:$true] %s99
      %105 = dma.vmem_to_hbm [thread:$0]  %s100, 256, %s3, [#allocation3], 128, 128, 8
    $region17: #{decoder_rnn_forward.5} parent=1 // pred_fallthru
      _
    // Predicated region
    $region18: #{decoder_rnn_forward.5} parent=1 // pred_check
      _
    $region19: #{decoder_rnn_forward.5} parent=1 // pred_check_branch
      %107 = sbr.rel (0) target = $region21
    $region20: #{decoder_rnn_forward.5} parent=1 // pred_region
      %108 = dma.done [#allocation3], 256
    $region21: #{decoder_rnn_forward.5} parent=1 // pred_fallthru
      _
    %109 = vsyncpa [#allocation3], 1

// kernel: decoder_rnn_forward.4
$region0: #{decoder_rnn_forward.4}
  #allocation0 [shape = 'u32[]', space=smem, size = 0x4, offset = 0x4, fixed_abs, tag = 'smem constant byte address 0x4 - core index']
  #allocation1 [shape = 'u32[144,128]{1,0:T(1,128)}', space=vmem, size = 0x12000, scoped, tag = 'internal scratch']
  #allocation2 [shape = 'f32[2,32]{1,0:T(2,128)}', space=vmem, size = 0x400, scoped, tag = 'scratch operand']
  #allocation3 [shape = 'f32[2,32]{1,0:T(2,128)}', space=vmem, size = 0x400, scoped, tag = 'scratch operand']
  %s0 = inlined_call_operand.vmem [shape: f32[8,2,128], index: 0, kind: input, shape index: {}]
  %s1 = inlined_call_operand.vmem [shape: bf16[32,128], index: 1, kind: input, shape index: {}]
  %s2 = inlined_call_operand.vmem [shape: bf16[8,2,32], index: 2, kind: output, shape index: {}]
  %s3 = sld [smem:[#allocation0]]
  $region52: #{decoder_rnn_forward.4} parent=0
    _
  %s5 = ssub.s32 1, %s3
  %s6 = scalar_select 0, %s5, %s3
  loop: start=0, step=1, limit=4
  $region2: #{decoder_rnn_forward.4} parent=0 // loop_pre_header
    _
  $region3: #{decoder_rnn_forward.4} parent=0 // loop_header
    %s8 = sphi 0, %s12
    %p9 = scmp.ge.s32.totalorder %s8, 4
    %s15 = sphi 0, %s27
    %s16 = sphi 0, %s23
    %s17 = sphi 0, %s15
    %s18 = sphi 0, %s16
    %s19 = sphi 0, %s17
    %s20 = sphi 0, %s18
    %s32 = sphi 0, %s34
    %s35 = sphi 0, %s32
    %s36 = sphi 0, %s35
    %s52 = sphi 0, %s36
    %s56 = sphi 0, %s56
    %s58 = sphi 0, %s56
    %s59 = sphi 0, %s58
    %s73 = sphi 0, %s59
    %s81 = sphi 0, %s83
    %s84 = sphi 0, %s81
    %s85 = sphi 0, %s84
    %s101 = sphi 0, %s85
  $region4: #{decoder_rnn_forward.4} parent=0 // loop_header_branch
    %11 = sbr.rel (%p9) target = $region8
  $region5: #{decoder_rnn_forward.4} parent=0 // loop_body
    %s13 = ssub.s32 %s8, 1
    %s14 = ssub.s32 %s8, 2
    %s21 = sadd.s32 1, %s16
    %p22 = scmp.ge.s32.totalorder %s21, 2
    %s23 = scalar_select %p22, 0, %s21
    %s24 = sadd.s32 1, %s15
    %s25 = scalar_select %p22, %s24, %s15
    %p26 = scmp.ge.s32.totalorder %s25, 1
    %s27 = scalar_select %p26, 0, %s25
    %s28 = ssub.s32 %s16, %s23
    %s29 = ssub.s32 %s15, %s27
    %s30 = sor.u32 %s28, %s29
    %p31 = scmp.eq.s32.totalorder %s30, 0
    %s33 = sadd.s32 %s32, 1
    %s34 = scalar_select %p31, %s32, %s33
    %p37 = pneg %p31
    %p38 = scmp.eq.s32.totalorder %s8, 1
    %p39 = por %p37, %p38
    %p40 = scmp.ne.s32.totalorder %s32, %s35
    %p41 = scmp.eq.s32.totalorder %s8, 0
    %p42 = por %p40, %p41
    %p43 = scmp.ne.s32.totalorder %s32, %s35
    %p44 = scmp.eq.s32.totalorder %s13, 1
    %p45 = por %p43, %p44
    %p46 = scmp.ne.s32.totalorder %s35, %s36
    %p47 = scmp.eq.s32.totalorder %s13, 0
    %p48 = por %p46, %p47
    %p49 = scmp.ne.s32.totalorder %s35, %s36
    %p50 = scmp.eq.s32.totalorder %s14, 1
    %p51 = por %p49, %p50
    %p53 = scmp.ne.s32.totalorder %s36, %s52
    %p54 = scmp.eq.s32.totalorder %s14, 0
    %p55 = por %p53, %p54
    %s57 = sadd.s32 %s56, 1
    %p60 = scmp.eq.s32.totalorder %s8, 1
    %p61 = scmp.ne.s32.totalorder %s56, %s58
    %p62 = scmp.eq.s32.totalorder %s8, 0
    %p63 = por %p61, %p62
    %p64 = scmp.ne.s32.totalorder %s56, %s58
    %p65 = scmp.eq.s32.totalorder %s13, 1
    %p66 = por %p64, %p65
    %p67 = scmp.ne.s32.totalorder %s58, %s59
    %p68 = scmp.eq.s32.totalorder %s13, 0
    %p69 = por %p67, %p68
    %p70 = scmp.ne.s32.totalorder %s58, %s59
    %p71 = scmp.eq.s32.totalorder %s14, 1
    %p72 = por %p70, %p71
    %p74 = scmp.ne.s32.totalorder %s59, %s73
    %p75 = scmp.eq.s32.totalorder %s14, 0
    %p76 = por %p74, %p75
    %s77 = ssub.s32 %s16, %s23
    %s78 = ssub.s32 %s15, %s27
    %s79 = sor.u32 %s77, %s78
    %p80 = scmp.eq.s32.totalorder %s79, 0
    %s82 = sadd.s32 %s81, 1
    %s83 = scalar_select %p80, %s81, %s82
    %p86 = pneg %p80
    %p87 = scmp.eq.s32.totalorder %s8, 1
    %p88 = por %p86, %p87
    %p89 = scmp.ne.s32.totalorder %s81, %s84
    %p90 = scmp.eq.s32.totalorder %s8, 0
    %p91 = por %p89, %p90
    %p92 = scmp.ne.s32.totalorder %s81, %s84
    %p93 = scmp.eq.s32.totalorder %s13, 1
    %p94 = por %p92, %p93
    %p95 = scmp.ne.s32.totalorder %s84, %s85
    %p96 = scmp.eq.s32.totalorder %s13, 0
    %p97 = por %p95, %p96
    %p98 = scmp.ne.s32.totalorder %s84, %s85
    %p99 = scmp.eq.s32.totalorder %s14, 1
    %p100 = por %p98, %p99
    %p102 = scmp.ne.s32.totalorder %s85, %s101
    %p103 = scmp.eq.s32.totalorder %s14, 0
    %p104 = por %p102, %p103
    %p105 = scmp.le.s32.totalorder 1, %s8
    %p106 = scmp.lt.s32.totalorder %s8, 3
    %p107 = pnand %p105, %p106
    %p108 = pneg %p107
    // Predicated region
    $region9: #{decoder_rnn_forward.4} parent=5 // pred_check
      _
    $region10: #{decoder_rnn_forward.4} parent=5 // pred_check_branch
      %110 = sbr.rel (%p107) target = $region12
    $region11: #{decoder_rnn_forward.4} parent=5 // pred_region
      %s111 = ssub.s32 %s8, 1
      // Predicated region
      $region13: #{decoder_rnn_forward.4} parent=11 // pred_check
        %p112 = pneg %p69
      $region14: #{decoder_rnn_forward.4} parent=11 // pred_check_branch
        %114 = sbr.rel (%p112) target = $region16
      $region15: #{decoder_rnn_forward.4} parent=11 // pred_region
        _
      $region16: #{decoder_rnn_forward.4} parent=11 // pred_fallthru
        _
    $region12: #{decoder_rnn_forward.4} parent=5 // pred_fallthru
      _
    %p115 = scmp.lt.s32.totalorder %s8, 2
    // Predicated region
    $region17: #{decoder_rnn_forward.4} parent=5 // pred_check
      %p116 = pneg %p115
    $region18: #{decoder_rnn_forward.4} parent=5 // pred_check_branch
      %118 = sbr.rel (%p116) target = $region20
    $region19: #{decoder_rnn_forward.4} parent=5 // pred_region
      // Predicated region
      $region21: #{decoder_rnn_forward.4} parent=19 // pred_check
        %p119 = pneg %p42
      $region22: #{decoder_rnn_forward.4} parent=19 // pred_check_branch
        %121 = sbr.rel (%p119) target = $region24
      $region23: #{decoder_rnn_forward.4} parent=19 // pred_region
        %s122 = smul.u32 4, %s16
        %p123 = scmp.lt.s32.totalorder %s122, 7
        %s124 = scalar_select %p123, %s122, 7
        %p125 = scmp.lt.s32.totalorder %s15, 0
        %s126 = scalar_select %p125, %s15, 0
        %s127 = sadd.s32 %s126, %s124
        %s128 = smul.addr %s127, 2
        %s129 = scalar_lea.vmem %s0, %s128
        %s130 = smul.u32 4, %s16
      $region24: #{decoder_rnn_forward.4} parent=19 // pred_fallthru
        _
    $region20: #{decoder_rnn_forward.4} parent=5 // pred_fallthru
      _
    %p131 = scmp.le.s32.totalorder 1, %s8
    %p132 = scmp.lt.s32.totalorder %s8, 3
    %p133 = pnand %p131, %p132
    %p134 = pneg %p133
    // Predicated region
    $region25: #{decoder_rnn_forward.4} parent=5 // pred_check
      _
    $region26: #{decoder_rnn_forward.4} parent=5 // pred_check_branch
      %136 = sbr.rel (%p133) target = $region28
    $region27: #{decoder_rnn_forward.4} parent=5 // pred_region
      %s137 = ssub.s32 %s8, 1
      %s138 = smul.u32 4, %s18
      %p139 = scmp.lt.s32.totalorder %s138, 7
      %s140 = scalar_select %p139, %s138, 7
      %p141 = scmp.lt.s32.totalorder %s17, 0
      %s142 = scalar_select %p141, %s17, 0
      %s143 = sadd.s32 %s142, %s140
      %s144 = smul.addr %s143, 2
      %s145 = scalar_lea.vmem %s0, %s144
      %p146 = pneg %p48
      %p147 = pneg %p45
      %p148 = pneg %p69
      %p149 = pneg %p66
      %p150 = pneg %p97
      %p151 = pneg %p94
      %s152 = smul.u32 4, %s18
      %p153 = scmp.lt.s32.totalorder %s152, 7
      %s154 = scalar_select %p153, %s152, 7
      %p155 = scmp.lt.s32.totalorder %s17, 0
      %s156 = scalar_select %p155, %s17, 0
      %s157 = sadd.s32 %s156, %s154
      %s158 = scalar_lea.vmem %s2, %s157
      %s159 = smul.u32 4, %s18
      %p160 = scmp.lt.s32.totalorder %s159, 7
      %s161 = scalar_select %p160, %s159, 7
      %p162 = scmp.lt.s32.totalorder %s17, 0
      %s163 = scalar_select %p162, %s17, 0
      %s164 = sadd.s32 %s163, %s161
      %s165 = smul.addr %s164, 2
      %s166 = scalar_lea.vmem %s0, %s165
      %s167 = smul.u32 4, %s18
      %s168 = smul.u32 4, %s18
      %p169 = scmp.lt.s32.totalorder %s168, 7
      %s170 = scalar_select %p169, %s168, 7
      %p171 = scmp.lt.s32.totalorder %s17, 0
      %s172 = scalar_select %p171, %s17, 0
      %s173 = sadd.s32 %s172, %s170
      %s174 = scalar_lea.vmem %s2, %s173
      %s175 = smul.u32 4, %s18
      %p177 = scmp.eq.s32.totalorder %s18, 0
      // Predicated region
      $region29: #{decoder_rnn_forward.4} parent=27 // pred_check
        %p178 = pneg %p177
      $region30: #{decoder_rnn_forward.4} parent=27 // pred_check_branch
        %180 = sbr.rel (%p178) target = $region32
      $region31: #{decoder_rnn_forward.4} parent=27 // pred_region
        %vm181 = vcmask 254976
        %182 = vst.msk [vmem:[#allocation2] sm:$0x3] %vm181, 0.0
        %183 = vst.msk [vmem:[#allocation3] sm:$0x3] %vm181, 0.0
      $region32: #{decoder_rnn_forward.4} parent=27 // pred_fallthru
        _
      loop: start=0, step=1, limit=4
      $region33: #{decoder_rnn_forward.4} parent=27 // loop_pre_header
        _
      $region34: #{decoder_rnn_forward.4} parent=27 // loop_header
        %s185 = sphi 0, %s189
        %p186 = scmp.ge.s32.totalorder %s185, 4
      $region35: #{decoder_rnn_forward.4} parent=27 // loop_header_branch
        %188 = sbr.rel (%p186) target = $region39
      $region36: #{decoder_rnn_forward.4} parent=27 // loop_body
        %s190 = smul.u32 %s185, 2
        %s191 = scalar_lea.vmem %s166, %s190
        %v192 = vld [vmem:[%s191] sm:$0x3]
        %v193 = vld [vmem:[#allocation2] sm:$0x3]
        %v194 = vpack.c.bf16 %v193, %v193
        %v195 = vld [vmem:[%s1] sm:$0xf]
        %v196 = vld [vmem:[%s1 + $0x4] sm:$0xf]
        %v197 = vld [vmem:[%s1 + $0x8] sm:$0xf]
        %v198 = vld [vmem:[%s1 + $0xc] sm:$0xf]
        %v203 = vunpack.c.l.b16 %v195
        %v204 = vunpack.c.l.b16 %v196
        %v205 = vunpack.c.l.b16 %v197
        %v206 = vunpack.c.l.b16 %v198
        %v207 = vpack.c.b16 %v204, %v203
        %v208 = vpack.c.b16 %v206, %v205
        %vm211 = vcmask 261120
        %v213 = vsel %vm211, %v194, 0
        %215 = vmatprep.subr.bf16.mxu0 0
        %216 = vmatpush1.bf16.msra.mxu0 0
        %217 = vmatprep.subr.bf16.mxu0 0
        %218 = vmatpush1.bf16.msra.mxu0 0
        %219 = vmatprep.subr.bf16.mxu0 0
        %220 = vmatpush1.bf16.msra.mxu0 0
        %221 = vmatprep.subr.bf16.mxu0 0
        %222 = vmatpush1.bf16.msra.mxu0 0
        %223 = vmatprep.subr.bf16.mxu0 0
        %224 = vmatpush1.bf16.msra.mxu0 0
        %225 = vmatprep.subr.bf16.mxu0 0
        %226 = vmatpush1.bf16.msra.mxu0 0
        %227 = vmatprep.subr.bf16.mxu0 0
        %228 = vmatpush1.bf16.msra.mxu0 %v208
        %229 = vmatprep.subr.bf16.mxu0 0
        %230 = vmatpush1.bf16.msra.mxu0 %v207
        %231 = vmatprep.subr.bf16.mxu0 0
        %232 = vmatpush2.bf16.msra.mxu0 0
        %233 = vmatprep.subr.bf16.mxu0 0
        %234 = vmatpush2.bf16.msra.mxu0 0
        %235 = vmatprep.subr.bf16.mxu0 0
        %236 = vmatpush2.bf16.msra.mxu0 0
        %237 = vmatprep.subr.bf16.mxu0 0
        %238 = vmatpush2.bf16.msra.mxu0 0
        %239 = vmatprep.subr.bf16.mxu0 0
        %240 = vmatpush2.bf16.msra.mxu0 0
        %241 = vmatprep.subr.bf16.mxu0 0
        %242 = vmatpush2.bf16.msra.mxu0 0
        %243 = vmatprep.subr.bf16.mxu0 0
        %244 = vmatpush2.bf16.msra.mxu0 0
        %245 = vmatprep.subr.bf16.mxu0 0
        %246 = vmatpush2.bf16.msra.mxu0 0
        %247 = vmatprep.mubr.bf16.mxu0 0
        %248 = vmatmul.mubr.bf16.gmra.mxu0 %v213
        %v249 = vpop.f32.mrf.mxu0
        %v250 = vadd.f32 0.0, %v249
        %v251 = vpop.f32.mrf.mxu0
        %v252 = vpop.f32.mrf.mxu0
        %v253 = vpop.f32.mrf.mxu0
        %254 = vdwg.mxu0
        %v255 = vadd.f32 %v192, %v250
        %v256 = vld [vmem:[#allocation3] sm:$0x3]
        %v257 = vxor.u32 %v255, 2147483648
        %v258 = vmul.f32 %v257, 1.442695
        %v259 = vpow.pop %v258
        %v260 = vadd.f32 %v259, 1.0
        %v261 = vrcp.pop %v260
        %v262 = vmul.f32 1.0, %v261
        %v263 = vtanh.pop %v255
        %265 = vrot.lane.b32.xlu0 %v256, 32
        %v266 = vpop.permute.xlu0 %265
        %v268 = vmul.f32 %v262, %v266
        %270 = vrot.lane.b32.xlu0 %v263, 64
        %v271 = vpop.permute.xlu0 %270
        %v273 = vmul.f32 %v262, %v271
        %275 = vrot.lane.b32.xlu0 %v273, 32
        %v276 = vpop.permute.xlu0 %275
        %v278 = vadd.f32 %v268, %v276
        %v279 = vtanh.pop %v278
        %281 = vrot.lane.b32.xlu0 %v279, 64
        %v282 = vpop.permute.xlu0 %281
        %v284 = vmul.f32 %v262, %v282
        %286 = vrot.lane.b32.xlu0 %v278, 96
        %v287 = vpop.permute.xlu0 %286
        %vm289 = vcmask 254976
        %290 = vst.msk [vmem:[#allocation3] sm:$0x3] %vm289, %v287
        %292 = vrot.lane.b32.xlu0 %v284, 32
        %v293 = vpop.permute.xlu0 %292
        %295 = vst.msk [vmem:[#allocation2] sm:$0x3] %vm289, %v293
        %v296 = vld [vmem:[#allocation2] sm:$0x3]
        %v297 = vpack.c.bf16 %v296, %v296
        %s298 = scalar_lea.vmem %s174, %s185
        %vm299 = vcmask 253952
        %300 = vst.msk [vmem:[%s298] sm:$0x1] %vm299, %v297
      $region37: #{decoder_rnn_forward.4} parent=27 // loop_footer
        %s189 = sadd.s32 1, %s185
      $region38: #{decoder_rnn_forward.4} parent=27 // loop_footer_branch
        %184 = sbr.rel target = $region34
      $region39: #{decoder_rnn_forward.4} parent=27 // loop_exit
        _
      %s301 = smul.u32 4, %s18
      %p302 = scmp.lt.s32.totalorder %s301, 7
      %s303 = scalar_select %p302, %s301, 7
      %p304 = scmp.lt.s32.totalorder %s17, 0
      %s305 = scalar_select %p304, %s17, 0
      %s306 = sadd.s32 %s305, %s303
      %s307 = scalar_lea.vmem %s2, %s306
      // Predicated region
      $region40: #{decoder_rnn_forward.4} parent=27 // pred_check
        %p308 = pneg %p94
      $region41: #{decoder_rnn_forward.4} parent=27 // pred_check_branch
        %310 = sbr.rel (%p308) target = $region43
      $region42: #{decoder_rnn_forward.4} parent=27 // pred_region
        %s311 = smul.u32 4, %s18
      $region43: #{decoder_rnn_forward.4} parent=27 // pred_fallthru
        _
    $region28: #{decoder_rnn_forward.4} parent=5 // pred_fallthru
      _
    %p312 = scmp.le.s32.totalorder 2, %s8
    // Predicated region
    $region44: #{decoder_rnn_forward.4} parent=5 // pred_check
      %p313 = pneg %p312
    $region45: #{decoder_rnn_forward.4} parent=5 // pred_check_branch
      %315 = sbr.rel (%p313) target = $region47
    $region46: #{decoder_rnn_forward.4} parent=5 // pred_region
      %s316 = ssub.s32 %s8, 2
      // Predicated region
      $region48: #{decoder_rnn_forward.4} parent=46 // pred_check
        %p317 = pneg %p100
      $region49: #{decoder_rnn_forward.4} parent=46 // pred_check_branch
        %319 = sbr.rel (%p317) target = $region51
      $region50: #{decoder_rnn_forward.4} parent=46 // pred_region
        %s320 = smul.u32 4, %s20
        %p321 = scmp.lt.s32.totalorder %s320, 7
        %s322 = scalar_select %p321, %s320, 7
        %p323 = scmp.lt.s32.totalorder %s19, 0
        %s324 = scalar_select %p323, %s19, 0
        %s325 = sadd.s32 %s324, %s322
        %s326 = scalar_lea.vmem %s2, %s325
      $region51: #{decoder_rnn_forward.4} parent=46 // pred_fallthru
        _
    $region47: #{decoder_rnn_forward.4} parent=5 // pred_fallthru
      _
  $region6: #{decoder_rnn_forward.4} parent=0 // loop_footer
    %s12 = sadd.s32 1, %s8
  $region7: #{decoder_rnn_forward.4} parent=0 // loop_footer_branch
    %7 = sbr.rel target = $region3
  $region8: #{decoder_rnn_forward.4} parent=0 // loop_exit
    _

</llo_original>
